<compile_context>
chip_gen: v7x
topology: tpu7x:2x2x1
jax: 0.10.0
libtpu: 0.0.40
codegen_flags: <defaults>
</compile_context>

<pallas_src>
import functools

import numpy as np
import jax
import jax.numpy as jnp
from jax.experimental import pallas as pl
from jax.experimental.pallas import tpu as pltpu

_LABEL2MASK_THRESHOL = 100  # same constant as the reference implementation


# ----------------------------------------------------------------------------
# Small helpers
# ----------------------------------------------------------------------------
def _round_up(x, m):
    return (x + m - 1) // m * m


def _pad2(a, rows, cols):
    r, c = a.shape
    if r == rows and c == cols:
        return a
    return jnp.pad(a, ((0, rows - r), (0, cols - c)))


def _pick_tk(kp, cap=2048):
    """Pick a K tile <= cap; pad K further only if no nice divisor exists."""
    if kp <= cap:
        return kp, kp
    for tk in (2048, 1792, 1536, 1280, 1024, 896, 768, 640, 512, 384, 256, 128):
        if tk <= cap and kp % tk == 0:
            return tk, kp
    return cap, _round_up(kp, cap)


# ----------------------------------------------------------------------------
# Generic tiled matmul + bias (+ReLU):   o = act(x @ w + b)
#   bf16 operands, f32 accumulation directly in the output block (no scratch).
# ----------------------------------------------------------------------------
def _linear_kernel(x_ref, w_ref, b_ref, o_ref, *, relu):
    @pl.when(pl.program_id(2) == 0)
    def _():
        o_ref[...] = jnp.zeros_like(o_ref)

    o_ref[...] += jnp.dot(x_ref[...], w_ref[...],
                          preferred_element_type=jnp.float32)

    @pl.when(pl.program_id(2) == pl.num_programs(2) - 1)
    def _():
        out = o_ref[...] + b_ref[...]
        if relu:
            out = jnp.maximum(out, 0.0)
        o_ref[...] = out


def pallas_linear(x, w, b, relu=False):
    """relu?(x @ w + b).  x:(M,K) w:(K,N) b:(N,).  Returns (M,N) float32."""
    x = jnp.asarray(x, jnp.float32)
    w = jnp.asarray(w, jnp.float32)
    b = jnp.asarray(b, jnp.float32).reshape(1, -1)
    M, K = x.shape
    K2, N = w.shape
    assert K == K2 and b.shape[1] == N

    # M tiles (bf16-friendly: multiples of 16), N tiles (multiples of 128 =>
    # lane-dense stores), budget-aware K tiles.
    Mp = _round_up(max(M, 16), 16)
    tm = Mp if Mp <= 256 else 256
    Mp = _round_up(Mp, tm)
    Np = _round_up(N, 128)
    tn = Np if Np <= 512 else 512
    Np = _round_up(Np, tn)
    tk, Kp = _pick_tk(_round_up(K, 128))

    xp = _pad2(x, Mp, Kp).astype(jnp.bfloat16)
    wp = _pad2(w, Kp, Np).astype(jnp.bfloat16)
    bp = _pad2(b, 1, Np)

    out = pl.pallas_call(
        functools.partial(_linear_kernel, relu=relu),
        out_shape=jax.ShapeDtypeStruct((Mp, Np), jnp.float32),
        grid=(Mp // tm, Np // tn, Kp // tk),
        in_specs=[
            pl.BlockSpec((tm, tk), lambda i, j, k: (i, k)),
            pl.BlockSpec((tk, tn), lambda i, j, k: (k, j)),
            pl.BlockSpec((1, tn), lambda i, j, k: (0, j)),
        ],
        out_specs=pl.BlockSpec((tm, tn), lambda i, j, k: (i, j)),
        compiler_params=pltpu.CompilerParams(
            dimension_semantics=("parallel", "parallel", "arbitrary")),
    )(xp, wp, bp)
    return out[:M, :N]


# ----------------------------------------------------------------------------
# Fused rotation-head FC stack:  relu(x@w1+b1) -> relu(.@w2+b2) -> .@w3+b3
#   (Dropout is identity in eval mode.)
# ----------------------------------------------------------------------------
def _rot_head_kernel(x_ref, w1_ref, b1_ref, w2_ref, b2_ref, w3_ref, b3_ref,
                     o_ref, acc_ref):
    k = pl.program_id(0)

    @pl.when(k == 0)
    def _():
        acc_ref[...] = jnp.zeros_like(acc_ref)

    acc_ref[...] += jnp.dot(x_ref[...], w1_ref[...],
                            preferred_element_type=jnp.float32)

    @pl.when(k == pl.num_programs(0) - 1)
    def _():
        h1 = jnp.maximum(acc_ref[...] + b1_ref[...], 0.0)
        h2 = jnp.dot(h1.astype(jnp.bfloat16), w2_ref[...],
                     preferred_element_type=jnp.float32) + b2_ref[...]
        h2 = jnp.maximum(h2, 0.0)
        o_ref[...] = jnp.dot(h2.astype(jnp.bfloat16), w3_ref[...],
                             preferred_element_type=jnp.float32) + b3_ref[...]


def pallas_rot_head(x, w1, b1, w2, b2, w3, b3):
    """Fused 3-layer MLP of the rotation regressor; tiled fallback if large."""
    x = jnp.asarray(x, jnp.float32)
    M, K = x.shape
    H = w1.shape[1]
    N3 = w3.shape[1]

    Mp = _round_up(max(M, 16), 16)
    N3p = _round_up(N3, 128)
    tk, Kp = _pick_tk(_round_up(K, 128))

    # VMEM estimate for the fused path (double-buffered streamed w1 tiles plus
    # resident w2/w3); fall back to tiled matmuls at very large hidden dims.
    est = (2 * (Mp * tk * 2 + tk * H * 2) + H * H * 2 + H * N3p * 2
           + Mp * H * 4 + 2 * Mp * N3p * 4)
    if H % 128 != 0 or est > 12 * 1024 * 1024:
        h = pallas_linear(x, w1, b1, relu=True)
        h = pallas_linear(h, w2, b2, relu=True)
        return pallas_linear(h, w3, b3, relu=False)

    xp = _pad2(x, Mp, Kp).astype(jnp.bfloat16)
    w1p = _pad2(jnp.asarray(w1, jnp.float32), Kp, H).astype(jnp.bfloat16)
    w2p = jnp.asarray(w2, jnp.float32).astype(jnp.bfloat16)
    w3p = _pad2(jnp.asarray(w3, jnp.float32), H, N3p).astype(jnp.bfloat16)
    b1p = jnp.asarray(b1, jnp.float32).reshape(1, H)
    b2p = jnp.asarray(b2, jnp.float32).reshape(1, H)
    b3p = _pad2(jnp.asarray(b3, jnp.float32).reshape(1, N3), 1, N3p)

    out = pl.pallas_call(
        _rot_head_kernel,
        out_shape=jax.ShapeDtypeStruct((Mp, N3p), jnp.float32),
        grid=(Kp // tk,),
        in_specs=[
            pl.BlockSpec((Mp, tk), lambda k: (0, k)),
            pl.BlockSpec((tk, H), lambda k: (k, 0)),
            pl.BlockSpec((1, H), lambda k: (0, 0)),
            pl.BlockSpec((H, H), lambda k: (0, 0)),
            pl.BlockSpec((1, H), lambda k: (0, 0)),
            pl.BlockSpec((H, N3p), lambda k: (0, 0)),
            pl.BlockSpec((1, N3p), lambda k: (0, 0)),
        ],
        out_specs=pl.BlockSpec((Mp, N3p), lambda k: (0, 0)),
        scratch_shapes=[pltpu.VMEM((Mp, H), jnp.float32)],
        compiler_params=pltpu.CompilerParams(
            dimension_semantics=("arbitrary",)),
    )(xp, w1p, b1p, w2p, b2p, w3p, b3p)
    return out[:M, :N3]


# ----------------------------------------------------------------------------
# Fused x8 bilinear upsample (NHWC, channels on lanes) + softmax + argmax over
# the first n_seg channels.  Channels >= n_seg (translation / zero padding)
# pass through the upsample untouched.
# ----------------------------------------------------------------------------
def _upsample_softmax_kernel(x_ref, mh_ref, mw_ref, o_ref, a_ref, *, n_seg):
    x = x_ref[0]                       # (Hf, Wf, C)  f32, C on lanes
    mh = mh_ref[...]                   # (tho, Hf)
    mw = mw_ref[...]                   # (Wo, Wf)
    Hf, Wf, C = x.shape
    tho = mh.shape[0]
    Wo = mw.shape[0]

    # Upsample along W for each coarse row (VPU broadcast-madds; contraction
    # dims are tiny so no degenerate K=8 MXU matmuls, no transposes).
    t = []
    for h in range(Hf):
        xh = x[h]                      # (Wf, C)
        acc = jnp.zeros((Wo, C), jnp.float32)
        for w in range(Wf):
            acc = acc + mw[:, w:w + 1] * xh[w:w + 1, :]
        t.append(acc)

    # Upsample along H.
    y = jnp.zeros((tho, Wo, C), jnp.float32)
    for h in range(Hf):
        y = y + mh[:, h:h + 1][:, :, None] * t[h][None, :, :]

    # Masked softmax + argmax over the segmentation channels (lanes < n_seg).
    lane = jax.lax.broadcasted_iota(jnp.int32, (tho, Wo, C), 2)
    is_cls = lane < n_seg
    logit = jnp.where(is_cls, y, -jnp.inf)
    m = jnp.max(logit, axis=-1, keepdims=True)
    e = jnp.exp(jnp.where(is_cls, y - m, -jnp.inf))
    s = jnp.sum(e, axis=-1, keepdims=True)
    p = e * pl.reciprocal(s, approx=True)

    o_ref[0] = jnp.where(is_cls, p, y)
    # first-occurrence argmax; fill value stays inside [0, n_seg)
    a_ref[0] = jnp.min(jnp.where(logit >= m, lane, n_seg - 1), axis=-1)


def pallas_upsample_heads(coarse_nhwc, mh, mw, n_seg):
    B, Hf, Wf, C = coarse_nhwc.shape
    Ho, Wo = mh.shape[0], mw.shape[0]
    if Ho % 16 == 0:
        tho = 16
    elif Ho % 8 == 0:
        tho = 8
    else:
        tho = Ho
    return pl.pallas_call(
        functools.partial(_upsample_softmax_kernel, n_seg=n_seg),
        out_shape=(jax.ShapeDtypeStruct((B, Ho, Wo, C), jnp.float32),
                   jax.ShapeDtypeStruct((B, Ho, Wo), jnp.int32)),
        grid=(B, Ho // tho),
        in_specs=[
            pl.BlockSpec((1, Hf, Wf, C), lambda b, o: (b, 0, 0, 0)),
            pl.BlockSpec((tho, Hf), lambda b, o: (o, 0)),
            pl.BlockSpec((Wo, Wf), lambda b, o: (0, 0)),
        ],
        out_specs=(
            pl.BlockSpec((1, tho, Wo, C), lambda b, o: (b, o, 0, 0)),
            pl.BlockSpec((1, tho, Wo), lambda b, o: (b, o, 0)),
        ),
        compiler_params=pltpu.CompilerParams(
            dimension_semantics=("parallel", "parallel")),
    )(jnp.asarray(coarse_nhwc, jnp.float32), mh, mw)


# ----------------------------------------------------------------------------
# Bilinear interpolation matrix (align_corners=True == nn.UpsamplingBilinear2d)
# ----------------------------------------------------------------------------
def upsample_matrix(n_in, scale=8):
    n_out = n_in * scale
    M = np.zeros((n_out, n_in), np.float32)
    if n_in == 1:
        M[:, 0] = 1.0
        return jnp.asarray(M)
    src = np.arange(n_out, dtype=np.float64) * (n_in - 1) / (n_out - 1)
    i0 = np.clip(np.floor(src).astype(np.int64), 0, n_in - 1)
    i1 = np.minimum(i0 + 1, n_in - 1)
    w1 = src - i0
    w0 = 1.0 - w1
    for o in range(n_out):
        M[o, i0[o]] += w0[o]
        M[o, i1[o]] += w1[o]
    return jnp.asarray(M)  # (n_out, n_in)


# ----------------------------------------------------------------------------
# RoIAlign (torchvision semantics: aligned=False, sampling_ratio=2)
# ----------------------------------------------------------------------------
# TODO(synk): RoIAlign's dynamic bilinear gather has no clean BlockSpec
# expression; kept in plain JAX (would need manual DMA gather in Pallas).
def roi_align_jax(feat_nchw, rois, out_size=7, spatial_scale=1.0 / 8.0,
                  sampling_ratio=2):
    B, C, H, W = feat_nchw.shape
    N = rois.shape[0]
    bidx = rois[:, 0].astype(jnp.int32)
    rx1 = rois[:, 1] * spatial_scale
    ry1 = rois[:, 2] * spatial_scale
    rx2 = rois[:, 3] * spatial_scale
    ry2 = rois[:, 4] * spatial_scale
    roi_w = jnp.maximum(rx2 - rx1, 1.0)
    roi_h = jnp.maximum(ry2 - ry1, 1.0)
    bin_w = roi_w / out_size
    bin_h = roi_h / out_size
    g = jnp.arange(out_size, dtype=jnp.float32)
    s = jnp.arange(sampling_ratio, dtype=jnp.float32)
    ys = ry1[:, None, None] + (g[None, :, None]
                               + (s[None, None, :] + 0.5) / sampling_ratio) * bin_h[:, None, None]
    xs = rx1[:, None, None] + (g[None, :, None]
                               + (s[None, None, :] + 0.5) / sampling_ratio) * bin_w[:, None, None]
    Y = jnp.broadcast_to(ys[:, :, :, None, None],
                         (N, out_size, sampling_ratio, out_size, sampling_ratio))
    X = jnp.broadcast_to(xs[:, None, None, :, :],
                         (N, out_size, sampling_ratio, out_size, sampling_ratio))
    P = out_size * sampling_ratio * out_size * sampling_ratio
    Y = Y.reshape(N, P)
    X = X.reshape(N, P)
    valid = (Y > -1.0) & (Y < H) & (X > -1.0) & (X < W)
    y = jnp.clip(Y, 0.0, H - 1)
    x = jnp.clip(X, 0.0, W - 1)
    y0 = jnp.floor(y).astype(jnp.int32)
    x0 = jnp.floor(x).astype(jnp.int32)
    y1i = jnp.minimum(y0 + 1, H - 1)
    x1i = jnp.minimum(x0 + 1, W - 1)
    ly = y - y0.astype(jnp.float32)
    lx = x - x0.astype(jnp.float32)
    hy = 1.0 - ly
    hx = 1.0 - lx
    featN = feat_nchw[bidx].reshape(N, C, H * W)

    def gather(yi, xi):
        idx = jnp.broadcast_to((yi * W + xi)[:, None, :], (N, C, P))
        return jnp.take_along_axis(featN, idx, axis=2)

    v00, v01 = gather(y0, x0), gather(y0, x1i)
    v10, v11 = gather(y1i, x0), gather(y1i, x1i)
    out = (v00 * (hy * hx)[:, None, :] + v01 * (hy * lx)[:, None, :]
           + v10 * (ly * hx)[:, None, :] + v11 * (ly * lx)[:, None, :])
    out = out * valid[:, None, :].astype(out.dtype)
    out = out.reshape(N, C, out_size, sampling_ratio, out_size, sampling_ratio)
    return out.mean(axis=(3, 5))  # (N, C, 7, 7)


# ----------------------------------------------------------------------------
# Host-side data-dependent glue (bbx extraction, rotation estimation)
# ----------------------------------------------------------------------------
def bbx_from_label(label_np, num_classes):
    bbx = []
    for batch_id in range(label_np.shape[0]):
        for cls_id in range(num_classes):
            if cls_id != 0:
                ys, xs = np.where(label_np[batch_id] == cls_id)
                if ys.size >= _LABEL2MASK_THRESHOL:
                    bbx.append([batch_id, xs.min(), ys.min(),
                                xs.max(), ys.max(), cls_id])
    if not bbx:
        return np.zeros((0, 6), np.float32)
    return np.asarray(bbx, np.float32)


def quaternion_to_matrix_np(q):
    r, i, j, k = q[:, 0], q[:, 1], q[:, 2], q[:, 3]
    two_s = 2.0 / np.maximum((q * q).sum(-1), 1e-12)
    R = np.stack([
        1 - two_s * (j * j + k * k), two_s * (i * j - k * r), two_s * (i * k + j * r),
        two_s * (i * j + k * r), 1 - two_s * (i * i + k * k), two_s * (j * k - i * r),
        two_s * (i * k - j * r), two_s * (j * k + i * r), 1 - two_s * (i * i + j * j),
    ], axis=-1).reshape(-1, 3, 3)
    return R.astype(np.float32)


def estimate_rotation(quat_map_np, bbx):
    cls = bbx[:, 5].astype(np.int32)
    qs = np.stack([quat_map_np[i, (cls[i] - 1) * 4:cls[i] * 4]
                   for i in range(bbx.shape[0])])
    qs = qs / np.maximum(np.linalg.norm(qs, axis=1, keepdims=True), 1e-12)
    return quaternion_to_matrix_np(qs), cls


# ----------------------------------------------------------------------------
# Parameters (deterministic synthetic init; mirrors the torch layer shapes)
# ----------------------------------------------------------------------------
def _kaiming(key, shape, fan_in):
    return jax.random.normal(key, shape, jnp.float32) * np.sqrt(2.0 / fan_in)


def init_params(key, num_classes=10, hidden_dim=256, feature_dim=256,
                roi_shape=7, seg_hidden=64, trans_hidden=128, Hf=8, Wf=8):
    ks = jax.random.split(key, 12)
    nc = num_classes
    n_seg = nc + 1
    p = {"num_classes": nc}

    # SegmentationRegressor: Conv1x1(256->64)+ReLU, up x8, Conv1x1(64->nc+1)
    seg_w1 = _kaiming(ks[0], (feature_dim, seg_hidden), feature_dim)
    seg_b1 = jnp.zeros((seg_hidden,), jnp.float32)
    seg_w2 = jax.random.normal(ks[1], (seg_hidden, n_seg),
                               jnp.float32) / np.sqrt(seg_hidden)
    seg_b2 = jax.random.normal(ks[2], (n_seg,), jnp.float32) * 0.01
    # TranslationRegressor: Conv1x1(256->128)+ReLU, up x8, Conv1x1(128->3*nc)
    trans_w1 = _kaiming(ks[3], (feature_dim, trans_hidden), feature_dim)
    trans_b1 = jnp.zeros((trans_hidden,), jnp.float32)
    trans_w2 = jax.random.normal(ks[4], (trans_hidden, 3 * nc),
                                 jnp.float32) / np.sqrt(trans_hidden)
    trans_b2 = jax.random.normal(ks[5], (3 * nc,), jnp.float32) * 0.01

    # Packed coarse heads: layer-1 channels concatenated, layer-2 block-diag,
    # output channels zero-padded to a lane-dense multiple of 128.
    c_comb = n_seg + 3 * nc
    c_up = _round_up(c_comb, 128)
    p["head_w1"] = jnp.concatenate([seg_w1, trans_w1], axis=1)
    p["head_b1"] = jnp.concatenate([seg_b1, trans_b1], axis=0)
    head_w2 = jnp.zeros((seg_hidden + trans_hidden, c_up), jnp.float32)
    head_w2 = head_w2.at[:seg_hidden, :n_seg].set(seg_w2)
    head_w2 = head_w2.at[seg_hidden:, n_seg:c_comb].set(trans_w2)
    head_b2 = jnp.zeros((c_up,), jnp.float32)
    head_b2 = head_b2.at[:n_seg].set(seg_b2)
    head_b2 = head_b2.at[n_seg:c_comb].set(trans_b2)
    p["head_w2"] = head_w2
    p["head_b2"] = head_b2

    # RotationRegressor FCs: (256*7*7 -> hidden)+ReLU, (hidden->hidden)+ReLU,
    # (hidden -> 4*nc).  hidden_dim reduced from 4096 for the small demo.
    fc_in = feature_dim * roi_shape * roi_shape
    p["rot_w1"] = _kaiming(ks[6], (fc_in, hidden_dim), fc_in)
    p["rot_b1"] = jnp.zeros((hidden_dim,), jnp.float32)
    p["rot_w2"] = _kaiming(ks[7], (hidden_dim, hidden_dim), hidden_dim)
    p["rot_b2"] = jnp.zeros((hidden_dim,), jnp.float32)
    p["rot_w3"] = jax.random.normal(ks[8], (hidden_dim, 4 * nc),
                                    jnp.float32) / np.sqrt(hidden_dim)
    p["rot_b3"] = jax.random.normal(ks[9], (4 * nc,), jnp.float32) * 0.01

    # Precomputed align_corners=True bilinear interpolation matrices (x8);
    # nn.UpsamplingBilinear2d uses align_corners=True.
    p["up_h"] = upsample_matrix(Hf, 8)
    p["up_w"] = upsample_matrix(Wf, 8)
    return p


# ----------------------------------------------------------------------------
# PoseCNN forward (eval path)
# ----------------------------------------------------------------------------
def posecnn_forward(params, feature_nchw):
    # TODO(synk): Faster R-CNN ResNet50-FPN backbone has no Pallas equivalent;
    # the FPN level-'1' feature map is taken as the kernel input instead.
    B, Cf, Hf, Wf = feature_nchw.shape
    nc = params["num_classes"]
    n_seg = nc + 1
    Ho, Wo = 8 * Hf, 8 * Wf

    feat_rows = jnp.transpose(feature_nchw, (0, 2, 3, 1)).reshape(B * Hf * Wf, Cf)

    # Both 1x1-conv heads evaluated at coarse resolution with packed weights
    # (conv2 commutes exactly with the linear bilinear upsample).
    h = pallas_linear(feat_rows, params["head_w1"], params["head_b1"], relu=True)
    coarse = pallas_linear(h, params["head_w2"], params["head_b2"], relu=False)
    coarse_nhwc = coarse.reshape(B, Hf, Wf, coarse.shape[1])

    # Fused x8 upsample + softmax + argmax (lane-dense 128-channel output).
    up, segmentation = pallas_upsample_heads(coarse_nhwc, params["up_h"],
                                             params["up_w"], n_seg)
    probability = jnp.transpose(up[..., :n_seg], (0, 3, 1, 2))
    translation = jnp.transpose(up[..., n_seg:n_seg + 3 * nc], (0, 3, 1, 2))

    # --- bounding boxes from the segmentation labels (data-dependent, host) ---
    bbx = bbx_from_label(np.asarray(jax.device_get(segmentation)), nc)

    # TODO(synk): HoughVoting(segmentation, translation) and generate_pose
    # (per-object pixel voting + host numpy pose assembly) are omitted.

    pred_Rs, labels, quaternions = None, None, None
    if bbx.shape[0] > 0:
        roi_feat = roi_align_jax(feature_nchw, jnp.asarray(bbx[:, :5], jnp.float32))
        x = roi_feat.reshape(bbx.shape[0], -1)     # torch Flatten order (N, C*7*7)
        quaternions = pallas_rot_head(x, params["rot_w1"], params["rot_b1"],
                                      params["rot_w2"], params["rot_b2"],
                                      params["rot_w3"], params["rot_b3"])
        pred_Rs, labels = estimate_rotation(np.asarray(quaternions), bbx)

    return {
        "probability": probability,      # (B, nc+1, 8Hf, 8Wf) f32
        "segmentation": segmentation,    # (B, 8Hf, 8Wf) int32
        "translation": translation,      # (B, 3*nc, 8Hf, 8Wf) f32
        "bbx": bbx,                      # (N, 6) numpy
        "quaternions": quaternions,      # (N, 4*nc) f32 or None
        "pred_Rs": pred_Rs,              # (N, 3, 3) numpy or None
        "labels": labels,                # (N,) numpy or None
    }


# ----------------------------------------------------------------------------
# Demo
# ----------------------------------------------------------------------------
if __name__ == "__main__":
    num_classes = 10
    B, Cf, Hf, Wf = 2, 256, 8, 8          # FPN '1' feature map (small demo size)
    hidden_dim = 256                      # module default 4096; reduced for demo
    key = jax.random.PRNGKey(0)
    pkey, fkey = jax.random.split(key)
    params = init_params(pkey, num_classes=num_classes, hidden_dim=hidden_dim,
                         Hf=Hf, Wf=Wf)
    feature = jax.random.normal(fkey, (B, Cf, Hf, Wf), jnp.float32)

    out = posecnn_forward(params, feature)
    jax.block_until_ready((out["probability"], out["segmentation"],
                           out["translation"]))
    if out["quaternions"] is not None:
        jax.block_until_ready(out["quaternions"])
    else:
        # Exercise the rotation-head kernel even if no class mask cleared the
        # _LABEL2MASK_THRESHOL threshold with random weights.
        dummy_bbx = jnp.asarray([[0.0, 4.0, 4.0, 48.0, 48.0]], jnp.float32)
        roi = roi_align_jax(feature, dummy_bbx)
        q = pallas_rot_head(roi.reshape(1, -1),
                            params["rot_w1"], params["rot_b1"],
                            params["rot_w2"], params["rot_b2"],
                            params["rot_w3"], params["rot_b3"])
        jax.block_until_ready(q)
    print("KERNEL_OK")
</pallas_src>

<mosaic_0001>
module attributes {stable_mosaic.version = 11 : i64} {
  func.func @_linear_kernel(%arg0: i32, %arg1: i32, %arg2: i32, %arg3: memref<128x256xbf16, #tpu.memory_space<vmem>>, %arg4: memref<256x256xbf16, #tpu.memory_space<vmem>>, %arg5: memref<1x256xf32, #tpu.memory_space<vmem>>, %arg6: memref<128x256xf32, #tpu.memory_space<vmem>>) attributes {dimension_semantics = [#tpu.dimension_semantics<parallel>, #tpu.dimension_semantics<parallel>, #tpu.dimension_semantics<arbitrary>], iteration_bounds = array<i64: 1, 1, 1>, scalar_prefetch = 0 : i64, scratch_operands = 0 : i64, tpu.core_type = #tpu.core_type<tc>, window_params = [{transform_indices = @transform_0, window_bounds = array<i64: 128, 256>}, {transform_indices = @transform_1, window_bounds = array<i64: 256, 256>}, {transform_indices = @transform_2, window_bounds = array<i64: 1, 256>}, {transform_indices = @transform_3, window_bounds = array<i64: 128, 256>}]} {
    %c0_i32 = arith.constant 0 : i32
    %0 = arith.cmpi eq, %arg2, %c0_i32 : i32
    %1 = arith.extui %0 : i1 to i32
    %c0_i32_0 = arith.constant 0 : i32
    %2 = arith.cmpi ne, %1, %c0_i32_0 : i32
    scf.if %2 {
      %cst_10 = arith.constant 0.000000e+00 : f32
      %12 = vector.broadcast %cst_10 : f32 to vector<128x256xf32>
      %c0_11 = arith.constant 0 : index
      %c0_12 = arith.constant 0 : index
      %13 = vector.load %arg6[%c0_11, %c0_12] : memref<128x256xf32, #tpu.memory_space<vmem>>, vector<128x256xf32>
      tpu.vector_store %arg6[%c0_11, %c0_12], %12 {strides = array<i32>} : memref<128x256xf32, #tpu.memory_space<vmem>>, vector<128x256xf32>,
    } else {
    }
    %c0 = arith.constant 0 : index
    %c0_1 = arith.constant 0 : index
    %3 = vector.load %arg6[%c0, %c0_1] : memref<128x256xf32, #tpu.memory_space<vmem>>, vector<128x256xf32>
    %c0_2 = arith.constant 0 : index
    %c0_3 = arith.constant 0 : index
    %4 = vector.load %arg3[%c0_2, %c0_3] : memref<128x256xbf16, #tpu.memory_space<vmem>>, vector<128x256xbf16>
    %c0_4 = arith.constant 0 : index
    %c0_5 = arith.constant 0 : index
    %5 = vector.load %arg4[%c0_4, %c0_5] : memref<256x256xbf16, #tpu.memory_space<vmem>>, vector<256x256xbf16>
    %cst = arith.constant dense<0.000000e+00> : vector<128x256xf32>
    %6 = tpu.matmul %4, %5, %cst {dimension_numbers = #tpu.dot_dimension_numbers<[1], [0], [0], [1], [0, 0, 1, 1], [], []>} : vector<128x256xbf16>, vector<256x256xbf16>, vector<128x256xf32> -> vector<128x256xf32>
    %7 = arith.addf %3, %6 : vector<128x256xf32>
    %c0_6 = arith.constant 0 : index
    %c0_7 = arith.constant 0 : index
    %8 = vector.load %arg6[%c0_6, %c0_7] : memref<128x256xf32, #tpu.memory_space<vmem>>, vector<128x256xf32>
    tpu.vector_store %arg6[%c0_6, %c0_7], %7 {strides = array<i32>} : memref<128x256xf32, #tpu.memory_space<vmem>>, vector<128x256xf32>,
    %c0_i32_8 = arith.constant 0 : i32
    %9 = arith.cmpi eq, %arg2, %c0_i32_8 : i32
    %10 = arith.extui %9 : i1 to i32
    %c0_i32_9 = arith.constant 0 : i32
    %11 = arith.cmpi ne, %10, %c0_i32_9 : i32
    scf.if %11 {
      %c0_10 = arith.constant 0 : index
      %c0_11 = arith.constant 0 : index
      %12 = vector.load %arg6[%c0_10, %c0_11] : memref<128x256xf32, #tpu.memory_space<vmem>>, vector<128x256xf32>
      %c0_12 = arith.constant 0 : index
      %c0_13 = arith.constant 0 : index
      %13 = vector.load %arg5[%c0_12, %c0_13] : memref<1x256xf32, #tpu.memory_space<vmem>>, vector<1x256xf32>
      %14 = vector.broadcast %13 : vector<1x256xf32> to vector<128x256xf32>
      %15 = arith.addf %12, %14 : vector<128x256xf32>
      %cst_14 = arith.constant 0.000000e+00 : f32
      %16 = vector.broadcast %cst_14 : f32 to vector<128x256xf32>
      %17 = arith.maximumf %15, %16 : vector<128x256xf32>
      %c0_15 = arith.constant 0 : index
      %c0_16 = arith.constant 0 : index
      %18 = vector.load %arg6[%c0_15, %c0_16] : memref<128x256xf32, #tpu.memory_space<vmem>>, vector<128x256xf32>
      tpu.vector_store %arg6[%c0_15, %c0_16], %17 {strides = array<i32>} : memref<128x256xf32, #tpu.memory_space<vmem>>, vector<128x256xf32>,
    } else {
    }
    return
  }
  func.func @transform_0(%arg0: i32, %arg1: i32, %arg2: i32) -> (i32, i32) {
    %c0_i32 = arith.constant 0 : i32
    return %arg0, %arg2 : i32, i32
  }
  func.func @transform_1(%arg0: i32, %arg1: i32, %arg2: i32) -> (i32, i32) {
    %c0_i32 = arith.constant 0 : i32
    return %arg2, %arg1 : i32, i32
  }
  func.func @transform_2(%arg0: i32, %arg1: i32, %arg2: i32) -> (i32, i32) {
    %c0_i32 = arith.constant 0 : i32
    %c0_i32_0 = arith.constant 0 : i32
    return %c0_i32, %arg1 : i32, i32
  }
  func.func @transform_3(%arg0: i32, %arg1: i32, %arg2: i32) -> (i32, i32) {
    %c0_i32 = arith.constant 0 : i32
    return %arg0, %arg1 : i32, i32
  }
}

</mosaic_0001>

<llo_original>
// kernel: tpu_custom_call.1
$region0: #{tpu_custom_call.1}
  #allocation0 [shape = 'u32[]', space=smem, size = 0x4, offset = 0x4, fixed_abs, tag = 'smem constant byte address 0x4 - core index']
  #allocation1 [shape = 'u32[144,128]{1,0:T(1,128)}', space=vmem, size = 0x12000, scoped, tag = 'internal scratch']
  %s0 = inlined_call_operand.hbm [shape: bf16[128,256], index: 0, kind: input, shape index: {}]
  %s1 = inlined_call_operand.hbm [shape: bf16[256,256], index: 1, kind: input, shape index: {}]
  %s2 = inlined_call_operand.vmem [shape: f32[1,256], index: 2, kind: input, shape index: {}]
  %s3 = inlined_call_operand.hbm [shape: f32[128,256], index: 3, kind: output, shape index: {}]
  %s4 = sld [smem:[#allocation0]]
  $region38: #{tpu_custom_call.1} parent=0
    _
  %s6 = ssub.s32 1, %s4
  %s7 = scalar_select 0, %s6, %s4
  $region1: #{tpu_custom_call.1} parent=0
    #allocation2 [shape = 'u8[65536]{0}', space=vmem, size = 0x10000, scoped, tag = 'input window, operand 0, single buffered']
    #allocation3 [shape = 's32[1]{0}', space=sflag, size = 0x4, scoped, tag = 'scoped memory for tpu_custom_call.1']
    #allocation4 [shape = 's32[1]{0}', space=sflag, size = 0x4, scoped, tag = 'scoped memory for tpu_custom_call.1']
    #allocation5 [shape = 'u8[131072]{0}', space=vmem, size = 0x20000, scoped, tag = 'input window, operand 1, single buffered']
    #allocation6 [shape = 's32[1]{0}', space=sflag, size = 0x4, scoped, tag = 'scoped memory for tpu_custom_call.1']
    #allocation7 [shape = 'u8[131072]{0}', space=vmem, size = 0x20000, scoped, tag = 'output window, operand 0, single buffered']
    %8 = vsyncpa [#allocation3], 0
    %9 = vsyncpa [#allocation6], 0
    %10 = vsyncpa [#allocation4], 0
    // Predicated region
    $region2: #{tpu_custom_call.1} parent=1 // pred_check
      _
    $region3: #{tpu_custom_call.1} parent=1 // pred_check_branch
      %12 = sbr.rel (0) target = $region5
    $region4: #{tpu_custom_call.1} parent=1 // pred_region
      %s14 = ssub.s32 2048, 2048
      %15 = vsyncadd [#allocation3], %s14
      %s16 = sshll.u32 [#allocation2], 4
      %s17 = int_to_ptr.vmem [resolvable:$true] %s16
      %22 = dma.hbm_to_vmem [thread:$0]  %s0, 2048, %s17, [#allocation3], 128, 128, 8
    $region5: #{tpu_custom_call.1} parent=1 // pred_fallthru
      _
    // Predicated region
    $region6: #{tpu_custom_call.1} parent=1 // pred_check
      _
    $region7: #{tpu_custom_call.1} parent=1 // pred_check_branch
      %24 = sbr.rel (0) target = $region9
    $region8: #{tpu_custom_call.1} parent=1 // pred_region
      %s26 = ssub.s32 4096, 4096
      %27 = vsyncadd [#allocation6], %s26
      %s28 = sshll.u32 [#allocation5], 4
      %s29 = int_to_ptr.vmem [resolvable:$true] %s28
      %34 = dma.hbm_to_vmem [thread:$0]  %s1, 4096, %s29, [#allocation6], 128, 128, 8
    $region9: #{tpu_custom_call.1} parent=1 // pred_fallthru
      _
    // Predicated region
    $region10: #{tpu_custom_call.1} parent=1 // pred_check
      _
    $region11: #{tpu_custom_call.1} parent=1 // pred_check_branch
      %36 = sbr.rel (0) target = $region13
    $region12: #{tpu_custom_call.1} parent=1 // pred_region
      _
    $region13: #{tpu_custom_call.1} parent=1 // pred_fallthru
      _
    // Predicated region
    $region14: #{tpu_custom_call.1} parent=1 // pred_check
      _
    $region15: #{tpu_custom_call.1} parent=1 // pred_check_branch
      %38 = sbr.rel (0) target = $region17
    $region16: #{tpu_custom_call.1} parent=1 // pred_region
      %39 = dma.done [#allocation3], 2048
    $region17: #{tpu_custom_call.1} parent=1 // pred_fallthru
      _
    // Predicated region
    $region18: #{tpu_custom_call.1} parent=1 // pred_check
      _
    $region19: #{tpu_custom_call.1} parent=1 // pred_check_branch
      %41 = sbr.rel (0) target = $region21
    $region20: #{tpu_custom_call.1} parent=1 // pred_region
      %42 = dma.done [#allocation6], 4096
    $region21: #{tpu_custom_call.1} parent=1 // pred_fallthru
      _
    %p43 = scmp.eq.s32.totalorder 0, 0
    // Predicated region
    $region22: #{tpu_custom_call.1} parent=1 // pred_check
      %p44 = pneg %p43
    $region23: #{tpu_custom_call.1} parent=1 // pred_check_branch
      %46 = sbr.rel (%p44) target = $region25
    $region24: #{tpu_custom_call.1} parent=1 // pred_region
      %47 = vst [vmem:[#allocation7] sm:$0xff] 0.0
      %48 = vst [vmem:[#allocation7 + $0x8] sm:$0xff] 0.0
      %49 = vst [vmem:[#allocation7 + $0x10] sm:$0xff] 0.0
      %50 = vst [vmem:[#allocation7 + $0x18] sm:$0xff] 0.0
      %51 = vst [vmem:[#allocation7 + $0x20] sm:$0xff] 0.0
      %52 = vst [vmem:[#allocation7 + $0x28] sm:$0xff] 0.0
      %53 = vst [vmem:[#allocation7 + $0x30] sm:$0xff] 0.0
      %54 = vst [vmem:[#allocation7 + $0x38] sm:$0xff] 0.0
      %55 = vst [vmem:[#allocation7 + $0x40] sm:$0xff] 0.0
      %56 = vst [vmem:[#allocation7 + $0x48] sm:$0xff] 0.0
      %57 = vst [vmem:[#allocation7 + $0x50] sm:$0xff] 0.0
      %58 = vst [vmem:[#allocation7 + $0x58] sm:$0xff] 0.0
      %59 = vst [vmem:[#allocation7 + $0x60] sm:$0xff] 0.0
      %60 = vst [vmem:[#allocation7 + $0x68] sm:$0xff] 0.0
      %61 = vst [vmem:[#allocation7 + $0x70] sm:$0xff] 0.0
      %62 = vst [vmem:[#allocation7 + $0x78] sm:$0xff] 0.0
      %63 = vst [vmem:[#allocation7 + $0x80] sm:$0xff] 0.0
      %64 = vst [vmem:[#allocation7 + $0x88] sm:$0xff] 0.0
      %65 = vst [vmem:[#allocation7 + $0x90] sm:$0xff] 0.0
      %66 = vst [vmem:[#allocation7 + $0x98] sm:$0xff] 0.0
      %67 = vst [vmem:[#allocation7 + $0xa0] sm:$0xff] 0.0
      %68 = vst [vmem:[#allocation7 + $0xa8] sm:$0xff] 0.0
      %69 = vst [vmem:[#allocation7 + $0xb0] sm:$0xff] 0.0
      %70 = vst [vmem:[#allocation7 + $0xb8] sm:$0xff] 0.0
      %71 = vst [vmem:[#allocation7 + $0xc0] sm:$0xff] 0.0
      %72 = vst [vmem:[#allocation7 + $0xc8] sm:$0xff] 0.0
      %73 = vst [vmem:[#allocation7 + $0xd0] sm:$0xff] 0.0
      %74 = vst [vmem:[#allocation7 + $0xd8] sm:$0xff] 0.0
      %75 = vst [vmem:[#allocation7 + $0xe0] sm:$0xff] 0.0
      %76 = vst [vmem:[#allocation7 + $0xe8] sm:$0xff] 0.0
      %77 = vst [vmem:[#allocation7 + $0xf0] sm:$0xff] 0.0
      %78 = vst [vmem:[#allocation7 + $0xf8] sm:$0xff] 0.0
    $region25: #{tpu_custom_call.1} parent=1 // pred_fallthru
      _
    %v79 = vld [vmem:[#allocation7] sm:$0xff]
    %v80 = vld [vmem:[#allocation7 + $0x8] sm:$0xff]
    %v81 = vld [vmem:[#allocation7 + $0x10] sm:$0xff]
    %v82 = vld [vmem:[#allocation7 + $0x18] sm:$0xff]
    %v83 = vld [vmem:[#allocation7 + $0x20] sm:$0xff]
    %v84 = vld [vmem:[#allocation7 + $0x28] sm:$0xff]
    %v85 = vld [vmem:[#allocation7 + $0x30] sm:$0xff]
    %v86 = vld [vmem:[#allocation7 + $0x38] sm:$0xff]
    %v87 = vld [vmem:[#allocation7 + $0x40] sm:$0xff]
    %v88 = vld [vmem:[#allocation7 + $0x48] sm:$0xff]
    %v89 = vld [vmem:[#allocation7 + $0x50] sm:$0xff]
    %v90 = vld [vmem:[#allocation7 + $0x58] sm:$0xff]
    %v91 = vld [vmem:[#allocation7 + $0x60] sm:$0xff]
    %v92 = vld [vmem:[#allocation7 + $0x68] sm:$0xff]
    %v93 = vld [vmem:[#allocation7 + $0x70] sm:$0xff]
    %v94 = vld [vmem:[#allocation7 + $0x78] sm:$0xff]
    %v95 = vld [vmem:[#allocation7 + $0x80] sm:$0xff]
    %v96 = vld [vmem:[#allocation7 + $0x88] sm:$0xff]
    %v97 = vld [vmem:[#allocation7 + $0x90] sm:$0xff]
    %v98 = vld [vmem:[#allocation7 + $0x98] sm:$0xff]
    %v99 = vld [vmem:[#allocation7 + $0xa0] sm:$0xff]
    %v100 = vld [vmem:[#allocation7 + $0xa8] sm:$0xff]
    %v101 = vld [vmem:[#allocation7 + $0xb0] sm:$0xff]
    %v102 = vld [vmem:[#allocation7 + $0xb8] sm:$0xff]
    %v103 = vld [vmem:[#allocation7 + $0xc0] sm:$0xff]
    %v104 = vld [vmem:[#allocation7 + $0xc8] sm:$0xff]
    %v105 = vld [vmem:[#allocation7 + $0xd0] sm:$0xff]
    %v106 = vld [vmem:[#allocation7 + $0xd8] sm:$0xff]
    %v107 = vld [vmem:[#allocation7 + $0xe0] sm:$0xff]
    %v108 = vld [vmem:[#allocation7 + $0xe8] sm:$0xff]
    %v109 = vld [vmem:[#allocation7 + $0xf0] sm:$0xff]
    %v110 = vld [vmem:[#allocation7 + $0xf8] sm:$0xff]
    %v111 = vld [vmem:[#allocation2] sm:$0xff]
    %v112 = vld [vmem:[#allocation2 + $0x8] sm:$0xff]
    %v113 = vld [vmem:[#allocation2 + $0x10] sm:$0xff]
    %v114 = vld [vmem:[#allocation2 + $0x18] sm:$0xff]
    %v115 = vld [vmem:[#allocation2 + $0x20] sm:$0xff]
    %v116 = vld [vmem:[#allocation2 + $0x28] sm:$0xff]
    %v117 = vld [vmem:[#allocation2 + $0x30] sm:$0xff]
    %v118 = vld [vmem:[#allocation2 + $0x38] sm:$0xff]
    %v119 = vld [vmem:[#allocation2 + $0x40] sm:$0xff]
    %v120 = vld [vmem:[#allocation2 + $0x48] sm:$0xff]
    %v121 = vld [vmem:[#allocation2 + $0x50] sm:$0xff]
    %v122 = vld [vmem:[#allocation2 + $0x58] sm:$0xff]
    %v123 = vld [vmem:[#allocation2 + $0x60] sm:$0xff]
    %v124 = vld [vmem:[#allocation2 + $0x68] sm:$0xff]
    %v125 = vld [vmem:[#allocation2 + $0x70] sm:$0xff]
    %v126 = vld [vmem:[#allocation2 + $0x78] sm:$0xff]
    %v127 = vld [vmem:[#allocation5] sm:$0xff]
    %v128 = vld [vmem:[#allocation5 + $0x8] sm:$0xff]
    %v129 = vld [vmem:[#allocation5 + $0x10] sm:$0xff]
    %v130 = vld [vmem:[#allocation5 + $0x18] sm:$0xff]
    %v131 = vld [vmem:[#allocation5 + $0x20] sm:$0xff]
    %v132 = vld [vmem:[#allocation5 + $0x28] sm:$0xff]
    %v133 = vld [vmem:[#allocation5 + $0x30] sm:$0xff]
    %v134 = vld [vmem:[#allocation5 + $0x38] sm:$0xff]
    %v135 = vld [vmem:[#allocation5 + $0x40] sm:$0xff]
    %v136 = vld [vmem:[#allocation5 + $0x48] sm:$0xff]
    %v137 = vld [vmem:[#allocation5 + $0x50] sm:$0xff]
    %v138 = vld [vmem:[#allocation5 + $0x58] sm:$0xff]
    %v139 = vld [vmem:[#allocation5 + $0x60] sm:$0xff]
    %v140 = vld [vmem:[#allocation5 + $0x68] sm:$0xff]
    %v141 = vld [vmem:[#allocation5 + $0x70] sm:$0xff]
    %v142 = vld [vmem:[#allocation5 + $0x78] sm:$0xff]
    %v143 = vld [vmem:[#allocation5 + $0x80] sm:$0xff]
    %v144 = vld [vmem:[#allocation5 + $0x88] sm:$0xff]
    %v145 = vld [vmem:[#allocation5 + $0x90] sm:$0xff]
    %v146 = vld [vmem:[#allocation5 + $0x98] sm:$0xff]
    %v147 = vld [vmem:[#allocation5 + $0xa0] sm:$0xff]
    %v148 = vld [vmem:[#allocation5 + $0xa8] sm:$0xff]
    %v149 = vld [vmem:[#allocation5 + $0xb0] sm:$0xff]
    %v150 = vld [vmem:[#allocation5 + $0xb8] sm:$0xff]
    %v151 = vld [vmem:[#allocation5 + $0xc0] sm:$0xff]
    %v152 = vld [vmem:[#allocation5 + $0xc8] sm:$0xff]
    %v153 = vld [vmem:[#allocation5 + $0xd0] sm:$0xff]
    %v154 = vld [vmem:[#allocation5 + $0xd8] sm:$0xff]
    %v155 = vld [vmem:[#allocation5 + $0xe0] sm:$0xff]
    %v156 = vld [vmem:[#allocation5 + $0xe8] sm:$0xff]
    %v157 = vld [vmem:[#allocation5 + $0xf0] sm:$0xff]
    %v158 = vld [vmem:[#allocation5 + $0xf8] sm:$0xff]
    %v175 = vunpack.c.l.b16 %v111
    %v176 = vunpack.c.h.b16 %v111
    %v177 = vunpack.c.l.b16 %v112
    %v178 = vunpack.c.h.b16 %v112
    %v179 = vunpack.c.l.b16 %v113
    %v180 = vunpack.c.h.b16 %v113
    %v181 = vunpack.c.l.b16 %v114
    %v182 = vunpack.c.h.b16 %v114
    %v183 = vunpack.c.l.b16 %v115
    %v184 = vunpack.c.h.b16 %v115
    %v185 = vunpack.c.l.b16 %v116
    %v186 = vunpack.c.h.b16 %v116
    %v187 = vunpack.c.l.b16 %v117
    %v188 = vunpack.c.h.b16 %v117
    %v189 = vunpack.c.l.b16 %v118
    %v190 = vunpack.c.h.b16 %v118
    %v191 = vunpack.c.l.b16 %v119
    %v192 = vunpack.c.h.b16 %v119
    %v193 = vunpack.c.l.b16 %v120
    %v194 = vunpack.c.h.b16 %v120
    %v195 = vunpack.c.l.b16 %v121
    %v196 = vunpack.c.h.b16 %v121
    %v197 = vunpack.c.l.b16 %v122
    %v198 = vunpack.c.h.b16 %v122
    %v199 = vunpack.c.l.b16 %v123
    %v200 = vunpack.c.h.b16 %v123
    %v201 = vunpack.c.l.b16 %v124
    %v202 = vunpack.c.h.b16 %v124
    %v203 = vunpack.c.l.b16 %v125
    %v204 = vunpack.c.h.b16 %v125
    %v205 = vunpack.c.l.b16 %v126
    %v206 = vunpack.c.h.b16 %v126
    %v207 = vpack.c.b16 %v177, %v175
    %v208 = vpack.c.b16 %v178, %v176
    %v209 = vpack.c.b16 %v181, %v179
    %v210 = vpack.c.b16 %v182, %v180
    %v211 = vpack.c.b16 %v185, %v183
    %v212 = vpack.c.b16 %v186, %v184
    %v213 = vpack.c.b16 %v189, %v187
    %v214 = vpack.c.b16 %v190, %v188
    %v215 = vpack.c.b16 %v193, %v191
    %v216 = vpack.c.b16 %v194, %v192
    %v217 = vpack.c.b16 %v197, %v195
    %v218 = vpack.c.b16 %v198, %v196
    %v219 = vpack.c.b16 %v201, %v199
    %v220 = vpack.c.b16 %v202, %v200
    %v221 = vpack.c.b16 %v205, %v203
    %v222 = vpack.c.b16 %v206, %v204
    %v271 = vunpack.c.l.b16 %v127
    %v272 = vunpack.c.h.b16 %v127
    %v273 = vunpack.c.l.b16 %v128
    %v274 = vunpack.c.h.b16 %v128
    %v275 = vunpack.c.l.b16 %v129
    %v276 = vunpack.c.h.b16 %v129
    %v277 = vunpack.c.l.b16 %v130
    %v278 = vunpack.c.h.b16 %v130
    %v279 = vunpack.c.l.b16 %v131
    %v280 = vunpack.c.h.b16 %v131
    %v281 = vunpack.c.l.b16 %v132
    %v282 = vunpack.c.h.b16 %v132
    %v283 = vunpack.c.l.b16 %v133
    %v284 = vunpack.c.h.b16 %v133
    %v285 = vunpack.c.l.b16 %v134
    %v286 = vunpack.c.h.b16 %v134
    %v287 = vunpack.c.l.b16 %v135
    %v288 = vunpack.c.h.b16 %v135
    %v289 = vunpack.c.l.b16 %v136
    %v290 = vunpack.c.h.b16 %v136
    %v291 = vunpack.c.l.b16 %v137
    %v292 = vunpack.c.h.b16 %v137
    %v293 = vunpack.c.l.b16 %v138
    %v294 = vunpack.c.h.b16 %v138
    %v295 = vunpack.c.l.b16 %v139
    %v296 = vunpack.c.h.b16 %v139
    %v297 = vunpack.c.l.b16 %v140
    %v298 = vunpack.c.h.b16 %v140
    %v299 = vunpack.c.l.b16 %v141
    %v300 = vunpack.c.h.b16 %v141
    %v301 = vunpack.c.l.b16 %v142
    %v302 = vunpack.c.h.b16 %v142
    %v303 = vunpack.c.l.b16 %v143
    %v304 = vunpack.c.h.b16 %v143
    %v305 = vunpack.c.l.b16 %v144
    %v306 = vunpack.c.h.b16 %v144
    %v307 = vunpack.c.l.b16 %v145
    %v308 = vunpack.c.h.b16 %v145
    %v309 = vunpack.c.l.b16 %v146
    %v310 = vunpack.c.h.b16 %v146
    %v311 = vunpack.c.l.b16 %v147
    %v312 = vunpack.c.h.b16 %v147
    %v313 = vunpack.c.l.b16 %v148
    %v314 = vunpack.c.h.b16 %v148
    %v315 = vunpack.c.l.b16 %v149
    %v316 = vunpack.c.h.b16 %v149
    %v317 = vunpack.c.l.b16 %v150
    %v318 = vunpack.c.h.b16 %v150
    %v319 = vunpack.c.l.b16 %v151
    %v320 = vunpack.c.h.b16 %v151
    %v321 = vunpack.c.l.b16 %v152
    %v322 = vunpack.c.h.b16 %v152
    %v323 = vunpack.c.l.b16 %v153
    %v324 = vunpack.c.h.b16 %v153
    %v325 = vunpack.c.l.b16 %v154
    %v326 = vunpack.c.h.b16 %v154
    %v327 = vunpack.c.l.b16 %v155
    %v328 = vunpack.c.h.b16 %v155
    %v329 = vunpack.c.l.b16 %v156
    %v330 = vunpack.c.h.b16 %v156
    %v331 = vunpack.c.l.b16 %v157
    %v332 = vunpack.c.h.b16 %v157
    %v333 = vunpack.c.l.b16 %v158
    %v334 = vunpack.c.h.b16 %v158
    %v335 = vpack.c.b16 %v273, %v271
    %v336 = vpack.c.b16 %v274, %v272
    %v337 = vpack.c.b16 %v277, %v275
    %v338 = vpack.c.b16 %v278, %v276
    %v339 = vpack.c.b16 %v281, %v279
    %v340 = vpack.c.b16 %v282, %v280
    %v341 = vpack.c.b16 %v285, %v283
    %v342 = vpack.c.b16 %v286, %v284
    %v343 = vpack.c.b16 %v289, %v287
    %v344 = vpack.c.b16 %v290, %v288
    %v345 = vpack.c.b16 %v293, %v291
    %v346 = vpack.c.b16 %v294, %v292
    %v347 = vpack.c.b16 %v297, %v295
    %v348 = vpack.c.b16 %v298, %v296
    %v349 = vpack.c.b16 %v301, %v299
    %v350 = vpack.c.b16 %v302, %v300
    %v351 = vpack.c.b16 %v305, %v303
    %v352 = vpack.c.b16 %v306, %v304
    %v353 = vpack.c.b16 %v309, %v307
    %v354 = vpack.c.b16 %v310, %v308
    %v355 = vpack.c.b16 %v313, %v311
    %v356 = vpack.c.b16 %v314, %v312
    %v357 = vpack.c.b16 %v317, %v315
    %v358 = vpack.c.b16 %v318, %v316
    %v359 = vpack.c.b16 %v321, %v319
    %v360 = vpack.c.b16 %v322, %v320
    %v361 = vpack.c.b16 %v325, %v323
    %v362 = vpack.c.b16 %v326, %v324
    %v363 = vpack.c.b16 %v329, %v327
    %v364 = vpack.c.b16 %v330, %v328
    %v365 = vpack.c.b16 %v333, %v331
    %v366 = vpack.c.b16 %v334, %v332
    %399 = vmatprep.subr.bf16.mxu0 %v336
    %400 = vmatpush1.bf16.msra.mxu0 %v335
    %401 = vmatprep.subr.bf16.mxu0 %v338
    %402 = vmatpush1.bf16.msra.mxu0 %v337
    %403 = vmatprep.subr.bf16.mxu0 %v340
    %404 = vmatpush1.bf16.msra.mxu0 %v339
    %405 = vmatprep.subr.bf16.mxu0 %v342
    %406 = vmatpush1.bf16.msra.mxu0 %v341
    %407 = vmatprep.subr.bf16.mxu0 %v344
    %408 = vmatpush1.bf16.msra.mxu0 %v343
    %409 = vmatprep.subr.bf16.mxu0 %v346
    %410 = vmatpush1.bf16.msra.mxu0 %v345
    %411 = vmatprep.subr.bf16.mxu0 %v348
    %412 = vmatpush1.bf16.msra.mxu0 %v347
    %413 = vmatprep.subr.bf16.mxu0 %v350
    %414 = vmatpush1.bf16.msra.mxu0 %v349
    %415 = vmatprep.subr.bf16.mxu0 %v352
    %416 = vmatpush1.bf16.msra.mxu0 %v351
    %417 = vmatprep.subr.bf16.mxu0 %v354
    %418 = vmatpush1.bf16.msra.mxu0 %v353
    %419 = vmatprep.subr.bf16.mxu0 %v356
    %420 = vmatpush1.bf16.msra.mxu0 %v355
    %421 = vmatprep.subr.bf16.mxu0 %v358
    %422 = vmatpush1.bf16.msra.mxu0 %v357
    %423 = vmatprep.subr.bf16.mxu0 %v360
    %424 = vmatpush1.bf16.msra.mxu0 %v359
    %425 = vmatprep.subr.bf16.mxu0 %v362
    %426 = vmatpush1.bf16.msra.mxu0 %v361
    %427 = vmatprep.subr.bf16.mxu0 %v364
    %428 = vmatpush1.bf16.msra.mxu0 %v363
    %429 = vmatprep.subr.bf16.mxu0 %v366
    %430 = vmatpush1.bf16.msra.mxu0 %v365
    %431 = vmatprep.mubr.bf16.mxu0 %v208
    %432 = vmatmul.mubr.bf16.gmra.mrb[0].mxu0 %v207
    %v433 = vpop.f32.mrb[0].mxu0
    %v434 = vadd.f32 0.0, %v433
    %v435 = vpop.f32.mrb[0].mxu0
    %v436 = vadd.f32 0.0, %v435
    %v437 = vpop.f32.mrb[0].mxu0
    %v438 = vadd.f32 0.0, %v437
    %v439 = vpop.f32.mrb[0].mxu0
    %v440 = vadd.f32 0.0, %v439
    %441 = vmatprep.mubr.bf16.mxu0 %v210
    %442 = vmatmul.mubr.bf16.gmra.mrb[0].mxu0 %v209
    %v443 = vpop.f32.mrb[0].mxu0
    %v444 = vadd.f32 0.0, %v443
    %v445 = vpop.f32.mrb[0].mxu0
    %v446 = vadd.f32 0.0, %v445
    %v447 = vpop.f32.mrb[0].mxu0
    %v448 = vadd.f32 0.0, %v447
    %v449 = vpop.f32.mrb[0].mxu0
    %v450 = vadd.f32 0.0, %v449
    %451 = vmatprep.mubr.bf16.mxu0 %v212
    %452 = vmatmul.mubr.bf16.gmra.mrb[0].mxu0 %v211
    %v453 = vpop.f32.mrb[0].mxu0
    %v454 = vadd.f32 0.0, %v453
    %v455 = vpop.f32.mrb[0].mxu0
    %v456 = vadd.f32 0.0, %v455
    %v457 = vpop.f32.mrb[0].mxu0
    %v458 = vadd.f32 0.0, %v457
    %v459 = vpop.f32.mrb[0].mxu0
    %v460 = vadd.f32 0.0, %v459
    %461 = vmatprep.mubr.bf16.mxu0 %v214
    %462 = vmatmul.mubr.bf16.gmra.mrb[0].mxu0 %v213
    %v463 = vpop.f32.mrb[0].mxu0
    %v464 = vadd.f32 0.0, %v463
    %v465 = vpop.f32.mrb[0].mxu0
    %v466 = vadd.f32 0.0, %v465
    %v467 = vpop.f32.mrb[0].mxu0
    %v468 = vadd.f32 0.0, %v467
    %v469 = vpop.f32.mrb[0].mxu0
    %v470 = vadd.f32 0.0, %v469
    %471 = vmatprep.mubr.bf16.mxu0 %v216
    %472 = vmatmul.mubr.bf16.gmra.mrb[0].mxu0 %v215
    %v473 = vpop.f32.mrb[0].mxu0
    %v474 = vadd.f32 0.0, %v473
    %v475 = vpop.f32.mrb[0].mxu0
    %v476 = vadd.f32 0.0, %v475
    %v477 = vpop.f32.mrb[0].mxu0
    %v478 = vadd.f32 0.0, %v477
    %v479 = vpop.f32.mrb[0].mxu0
    %v480 = vadd.f32 0.0, %v479
    %481 = vmatprep.mubr.bf16.mxu0 %v218
    %482 = vmatmul.mubr.bf16.gmra.mrb[0].mxu0 %v217
    %v483 = vpop.f32.mrb[0].mxu0
    %v484 = vadd.f32 0.0, %v483
    %v485 = vpop.f32.mrb[0].mxu0
    %v486 = vadd.f32 0.0, %v485
    %v487 = vpop.f32.mrb[0].mxu0
    %v488 = vadd.f32 0.0, %v487
    %v489 = vpop.f32.mrb[0].mxu0
    %v490 = vadd.f32 0.0, %v489
    %491 = vmatprep.mubr.bf16.mxu0 %v220
    %492 = vmatmul.mubr.bf16.gmra.mrb[0].mxu0 %v219
    %v493 = vpop.f32.mrb[0].mxu0
    %v494 = vadd.f32 0.0, %v493
    %v495 = vpop.f32.mrb[0].mxu0
    %v496 = vadd.f32 0.0, %v495
    %v497 = vpop.f32.mrb[0].mxu0
    %v498 = vadd.f32 0.0, %v497
    %v499 = vpop.f32.mrb[0].mxu0
    %v500 = vadd.f32 0.0, %v499
    %501 = vmatprep.mubr.bf16.mxu0 %v222
    %502 = vmatmul.mubr.bf16.gmra.mrb[0].mxu0 %v221
    %v503 = vpop.f32.mrb[0].mxu0
    %v504 = vadd.f32 0.0, %v503
    %v505 = vpop.f32.mrb[0].mxu0
    %v506 = vadd.f32 0.0, %v505
    %v507 = vpop.f32.mrb[0].mxu0
    %v508 = vadd.f32 0.0, %v507
    %v509 = vpop.f32.mrb[0].mxu0
    %v510 = vadd.f32 0.0, %v509
    %511 = vdwg.mxu0
    %v512 = vadd.f32 %v79, %v434
    %v513 = vadd.f32 %v80, %v436
    %v514 = vadd.f32 %v81, %v438
    %v515 = vadd.f32 %v82, %v440
    %v516 = vadd.f32 %v83, %v444
    %v517 = vadd.f32 %v84, %v446
    %v518 = vadd.f32 %v85, %v448
    %v519 = vadd.f32 %v86, %v450
    %v520 = vadd.f32 %v87, %v454
    %v521 = vadd.f32 %v88, %v456
    %v522 = vadd.f32 %v89, %v458
    %v523 = vadd.f32 %v90, %v460
    %v524 = vadd.f32 %v91, %v464
    %v525 = vadd.f32 %v92, %v466
    %v526 = vadd.f32 %v93, %v468
    %v527 = vadd.f32 %v94, %v470
    %v528 = vadd.f32 %v95, %v474
    %v529 = vadd.f32 %v96, %v476
    %v530 = vadd.f32 %v97, %v478
    %v531 = vadd.f32 %v98, %v480
    %v532 = vadd.f32 %v99, %v484
    %v533 = vadd.f32 %v100, %v486
    %v534 = vadd.f32 %v101, %v488
    %v535 = vadd.f32 %v102, %v490
    %v536 = vadd.f32 %v103, %v494
    %v537 = vadd.f32 %v104, %v496
    %v538 = vadd.f32 %v105, %v498
    %v539 = vadd.f32 %v106, %v500
    %v540 = vadd.f32 %v107, %v504
    %v541 = vadd.f32 %v108, %v506
    %v542 = vadd.f32 %v109, %v508
    %v543 = vadd.f32 %v110, %v510
    %544 = vst [vmem:[#allocation7] sm:$0xff] %v512
    %545 = vst [vmem:[#allocation7 + $0x8] sm:$0xff] %v513
    %546 = vst [vmem:[#allocation7 + $0x10] sm:$0xff] %v514
    %547 = vst [vmem:[#allocation7 + $0x18] sm:$0xff] %v515
    %548 = vst [vmem:[#allocation7 + $0x20] sm:$0xff] %v516
    %549 = vst [vmem:[#allocation7 + $0x28] sm:$0xff] %v517
    %550 = vst [vmem:[#allocation7 + $0x30] sm:$0xff] %v518
    %551 = vst [vmem:[#allocation7 + $0x38] sm:$0xff] %v519
    %552 = vst [vmem:[#allocation7 + $0x40] sm:$0xff] %v520
    %553 = vst [vmem:[#allocation7 + $0x48] sm:$0xff] %v521
    %554 = vst [vmem:[#allocation7 + $0x50] sm:$0xff] %v522
    %555 = vst [vmem:[#allocation7 + $0x58] sm:$0xff] %v523
    %556 = vst [vmem:[#allocation7 + $0x60] sm:$0xff] %v524
    %557 = vst [vmem:[#allocation7 + $0x68] sm:$0xff] %v525
    %558 = vst [vmem:[#allocation7 + $0x70] sm:$0xff] %v526
    %559 = vst [vmem:[#allocation7 + $0x78] sm:$0xff] %v527
    %560 = vst [vmem:[#allocation7 + $0x80] sm:$0xff] %v528
    %561 = vst [vmem:[#allocation7 + $0x88] sm:$0xff] %v529
    %562 = vst [vmem:[#allocation7 + $0x90] sm:$0xff] %v530
    %563 = vst [vmem:[#allocation7 + $0x98] sm:$0xff] %v531
    %564 = vst [vmem:[#allocation7 + $0xa0] sm:$0xff] %v532
    %565 = vst [vmem:[#allocation7 + $0xa8] sm:$0xff] %v533
    %566 = vst [vmem:[#allocation7 + $0xb0] sm:$0xff] %v534
    %567 = vst [vmem:[#allocation7 + $0xb8] sm:$0xff] %v535
    %568 = vst [vmem:[#allocation7 + $0xc0] sm:$0xff] %v536
    %569 = vst [vmem:[#allocation7 + $0xc8] sm:$0xff] %v537
    %570 = vst [vmem:[#allocation7 + $0xd0] sm:$0xff] %v538
    %571 = vst [vmem:[#allocation7 + $0xd8] sm:$0xff] %v539
    %572 = vst [vmem:[#allocation7 + $0xe0] sm:$0xff] %v540
    %573 = vst [vmem:[#allocation7 + $0xe8] sm:$0xff] %v541
    %574 = vst [vmem:[#allocation7 + $0xf0] sm:$0xff] %v542
    %575 = vst [vmem:[#allocation7 + $0xf8] sm:$0xff] %v543
    // Predicated region
    $region26: #{tpu_custom_call.1} parent=1 // pred_check
      %p576 = pneg %p43
    $region27: #{tpu_custom_call.1} parent=1 // pred_check_branch
      %578 = sbr.rel (%p576) target = $region29
    $region28: #{tpu_custom_call.1} parent=1 // pred_region
      %v579 = vld [vmem:[#allocation7] sm:$0xff]
      %v580 = vld [vmem:[#allocation7 + $0x8] sm:$0xff]
      %v581 = vld [vmem:[#allocation7 + $0x10] sm:$0xff]
      %v582 = vld [vmem:[#allocation7 + $0x18] sm:$0xff]
      %v583 = vld [vmem:[#allocation7 + $0x20] sm:$0xff]
      %v584 = vld [vmem:[#allocation7 + $0x28] sm:$0xff]
      %v585 = vld [vmem:[#allocation7 + $0x30] sm:$0xff]
      %v586 = vld [vmem:[#allocation7 + $0x38] sm:$0xff]
      %v587 = vld [vmem:[#allocation7 + $0x40] sm:$0xff]
      %v588 = vld [vmem:[#allocation7 + $0x48] sm:$0xff]
      %v589 = vld [vmem:[#allocation7 + $0x50] sm:$0xff]
      %v590 = vld [vmem:[#allocation7 + $0x58] sm:$0xff]
      %v591 = vld [vmem:[#allocation7 + $0x60] sm:$0xff]
      %v592 = vld [vmem:[#allocation7 + $0x68] sm:$0xff]
      %v593 = vld [vmem:[#allocation7 + $0x70] sm:$0xff]
      %v594 = vld [vmem:[#allocation7 + $0x78] sm:$0xff]
      %v595 = vld [vmem:[#allocation7 + $0x80] sm:$0xff]
      %v596 = vld [vmem:[#allocation7 + $0x88] sm:$0xff]
      %v597 = vld [vmem:[#allocation7 + $0x90] sm:$0xff]
      %v598 = vld [vmem:[#allocation7 + $0x98] sm:$0xff]
      %v599 = vld [vmem:[#allocation7 + $0xa0] sm:$0xff]
      %v600 = vld [vmem:[#allocation7 + $0xa8] sm:$0xff]
      %v601 = vld [vmem:[#allocation7 + $0xb0] sm:$0xff]
      %v602 = vld [vmem:[#allocation7 + $0xb8] sm:$0xff]
      %v603 = vld [vmem:[#allocation7 + $0xc0] sm:$0xff]
      %v604 = vld [vmem:[#allocation7 + $0xc8] sm:$0xff]
      %v605 = vld [vmem:[#allocation7 + $0xd0] sm:$0xff]
      %v606 = vld [vmem:[#allocation7 + $0xd8] sm:$0xff]
      %v607 = vld [vmem:[#allocation7 + $0xe0] sm:$0xff]
      %v608 = vld [vmem:[#allocation7 + $0xe8] sm:$0xff]
      %v609 = vld [vmem:[#allocation7 + $0xf0] sm:$0xff]
      %v610 = vld [vmem:[#allocation7 + $0xf8] sm:$0xff]
      %v611 = vld [vmem:[%s2] sm:$0x3]
      %v613 = vlaneseq
      %v614 = vshrl.u32 %v613, 7
      %v615 = vsub.s32 0, %v614
      %v616 = vrot.slane %v611, %v615
      %v617 = vlaneseq
      %v618 = vshrl.u32 %v617, 7
      %v619 = vsub.s32 1, %v618
      %v620 = vrot.slane %v611, %v619
      %v623 = vadd.f32 %v579, %v616
      %v624 = vadd.f32 %v580, %v620
      %v625 = vadd.f32 %v581, %v616
      %v626 = vadd.f32 %v582, %v620
      %v627 = vadd.f32 %v583, %v616
      %v628 = vadd.f32 %v584, %v620
      %v629 = vadd.f32 %v585, %v616
      %v630 = vadd.f32 %v586, %v620
      %v631 = vadd.f32 %v587, %v616
      %v632 = vadd.f32 %v588, %v620
      %v633 = vadd.f32 %v589, %v616
      %v634 = vadd.f32 %v590, %v620
      %v635 = vadd.f32 %v591, %v616
      %v636 = vadd.f32 %v592, %v620
      %v637 = vadd.f32 %v593, %v616
      %v638 = vadd.f32 %v594, %v620
      %v639 = vadd.f32 %v595, %v616
      %v640 = vadd.f32 %v596, %v620
      %v641 = vadd.f32 %v597, %v616
      %v642 = vadd.f32 %v598, %v620
      %v643 = vadd.f32 %v599, %v616
      %v644 = vadd.f32 %v600, %v620
      %v645 = vadd.f32 %v601, %v616
      %v646 = vadd.f32 %v602, %v620
      %v647 = vadd.f32 %v603, %v616
      %v648 = vadd.f32 %v604, %v620
      %v649 = vadd.f32 %v605, %v616
      %v650 = vadd.f32 %v606, %v620
      %v651 = vadd.f32 %v607, %v616
      %v652 = vadd.f32 %v608, %v620
      %v653 = vadd.f32 %v609, %v616
      %v654 = vadd.f32 %v610, %v620
      %v655 = vmax.f32 %v623, 0.0
      %v656 = vmax.f32 %v624, 0.0
      %v657 = vmax.f32 %v625, 0.0
      %v658 = vmax.f32 %v626, 0.0
      %v659 = vmax.f32 %v627, 0.0
      %v660 = vmax.f32 %v628, 0.0
      %v661 = vmax.f32 %v629, 0.0
      %v662 = vmax.f32 %v630, 0.0
      %v663 = vmax.f32 %v631, 0.0
      %v664 = vmax.f32 %v632, 0.0
      %v665 = vmax.f32 %v633, 0.0
      %v666 = vmax.f32 %v634, 0.0
      %v667 = vmax.f32 %v635, 0.0
      %v668 = vmax.f32 %v636, 0.0
      %v669 = vmax.f32 %v637, 0.0
      %v670 = vmax.f32 %v638, 0.0
      %v671 = vmax.f32 %v639, 0.0
      %v672 = vmax.f32 %v640, 0.0
      %v673 = vmax.f32 %v641, 0.0
      %v674 = vmax.f32 %v642, 0.0
      %v675 = vmax.f32 %v643, 0.0
      %v676 = vmax.f32 %v644, 0.0
      %v677 = vmax.f32 %v645, 0.0
      %v678 = vmax.f32 %v646, 0.0
      %v679 = vmax.f32 %v647, 0.0
      %v680 = vmax.f32 %v648, 0.0
      %v681 = vmax.f32 %v649, 0.0
      %v682 = vmax.f32 %v650, 0.0
      %v683 = vmax.f32 %v651, 0.0
      %v684 = vmax.f32 %v652, 0.0
      %v685 = vmax.f32 %v653, 0.0
      %v686 = vmax.f32 %v654, 0.0
      %687 = vst [vmem:[#allocation7] sm:$0xff] %v655
      %688 = vst [vmem:[#allocation7 + $0x8] sm:$0xff] %v656
      %689 = vst [vmem:[#allocation7 + $0x10] sm:$0xff] %v657
      %690 = vst [vmem:[#allocation7 + $0x18] sm:$0xff] %v658
      %691 = vst [vmem:[#allocation7 + $0x20] sm:$0xff] %v659
      %692 = vst [vmem:[#allocation7 + $0x28] sm:$0xff] %v660
      %693 = vst [vmem:[#allocation7 + $0x30] sm:$0xff] %v661
      %694 = vst [vmem:[#allocation7 + $0x38] sm:$0xff] %v662
      %695 = vst [vmem:[#allocation7 + $0x40] sm:$0xff] %v663
      %696 = vst [vmem:[#allocation7 + $0x48] sm:$0xff] %v664
      %697 = vst [vmem:[#allocation7 + $0x50] sm:$0xff] %v665
      %698 = vst [vmem:[#allocation7 + $0x58] sm:$0xff] %v666
      %699 = vst [vmem:[#allocation7 + $0x60] sm:$0xff] %v667
      %700 = vst [vmem:[#allocation7 + $0x68] sm:$0xff] %v668
      %701 = vst [vmem:[#allocation7 + $0x70] sm:$0xff] %v669
      %702 = vst [vmem:[#allocation7 + $0x78] sm:$0xff] %v670
      %703 = vst [vmem:[#allocation7 + $0x80] sm:$0xff] %v671
      %704 = vst [vmem:[#allocation7 + $0x88] sm:$0xff] %v672
      %705 = vst [vmem:[#allocation7 + $0x90] sm:$0xff] %v673
      %706 = vst [vmem:[#allocation7 + $0x98] sm:$0xff] %v674
      %707 = vst [vmem:[#allocation7 + $0xa0] sm:$0xff] %v675
      %708 = vst [vmem:[#allocation7 + $0xa8] sm:$0xff] %v676
      %709 = vst [vmem:[#allocation7 + $0xb0] sm:$0xff] %v677
      %710 = vst [vmem:[#allocation7 + $0xb8] sm:$0xff] %v678
      %711 = vst [vmem:[#allocation7 + $0xc0] sm:$0xff] %v679
      %712 = vst [vmem:[#allocation7 + $0xc8] sm:$0xff] %v680
      %713 = vst [vmem:[#allocation7 + $0xd0] sm:$0xff] %v681
      %714 = vst [vmem:[#allocation7 + $0xd8] sm:$0xff] %v682
      %715 = vst [vmem:[#allocation7 + $0xe0] sm:$0xff] %v683
      %716 = vst [vmem:[#allocation7 + $0xe8] sm:$0xff] %v684
      %717 = vst [vmem:[#allocation7 + $0xf0] sm:$0xff] %v685
      %718 = vst [vmem:[#allocation7 + $0xf8] sm:$0xff] %v686
    $region29: #{tpu_custom_call.1} parent=1 // pred_fallthru
      _
    // Predicated region
    $region30: #{tpu_custom_call.1} parent=1 // pred_check
      _
    $region31: #{tpu_custom_call.1} parent=1 // pred_check_branch
      %720 = sbr.rel (0) target = $region33
    $region32: #{tpu_custom_call.1} parent=1 // pred_region
      %s722 = ssub.s32 4096, 4096
      %723 = vsyncadd [#allocation4], %s722
      %s724 = sshll.u32 [#allocation7], 4
      %s725 = int_to_ptr.vmem [resolvable:$true] %s724
      %730 = dma.vmem_to_hbm [thread:$0]  %s725, 4096, %s3, [#allocation4], 256, 256, 16
    $region33: #{tpu_custom_call.1} parent=1 // pred_fallthru
      _
    // Predicated region
    $region34: #{tpu_custom_call.1} parent=1 // pred_check
      _
    $region35: #{tpu_custom_call.1} parent=1 // pred_check_branch
      %732 = sbr.rel (0) target = $region37
    $region36: #{tpu_custom_call.1} parent=1 // pred_region
      %733 = dma.done [#allocation4], 4096
    $region37: #{tpu_custom_call.1} parent=1 // pred_fallthru
      _
    %734 = vsyncpa [#allocation3], 1
    %735 = vsyncpa [#allocation6], 1
    %736 = vsyncpa [#allocation4], 1

</llo_original>
